<compile_context>
chip_gen: v6e
topology: v6e:2x2x1
jax: 0.10.0
libtpu: 0.0.40
codegen_flags: <defaults>
</compile_context>

<pallas_src>
import functools

import numpy as np
import jax
import jax.numpy as jnp
from jax.experimental import pallas as pl
from jax.experimental.pallas import tpu as pltpu

_MiB = 1024 * 1024


def _cdiv(a, b):
    return -(-a // b)


def _round_up(a, m):
    return _cdiv(a, m) * m


# ---------------------------------------------------------------------------
# Generation-aware VMEM / per-step payload targets.
# ---------------------------------------------------------------------------

def _vmem_capacity_bytes():
    try:
        info = pltpu.get_tpu_info()
        cap = getattr(info, "vmem_capacity_bytes", None)
        if cap:
            return int(cap)
    except Exception:
        pass
    return 128 * _MiB


_VMEM_CAP = _vmem_capacity_bytes()
# v5e/v6e (128 MiB physical VMEM): raise the scoped limit to 64 MiB.
# v7x-class (64 MiB physical): keep the limit at ~48 MiB.
_VMEM_LIMIT = min(64 * _MiB, (_VMEM_CAP * 3) // 4)
_VMEM_BUDGET = (_VMEM_LIMIT * 7) // 10
# Per-grid-step HBM payload target (in + out).  v7x-class chips have ~2.3x the
# HBM bandwidth, so the fixed ~0.35us per-step overhead needs bigger steps.
_STEP_PAYLOAD = 8 * _MiB if _VMEM_CAP <= 64 * _MiB else 4 * _MiB
_MIN_STEP_PAYLOAD = 1 * _MiB


def _batch_tile(B, D, itemsize, sub, vmem_bytes_fn):
    """Payload-sized batch tile, shrunk to the VMEM budget.

    Targets ~_STEP_PAYLOAD bytes of in+out HBM traffic per grid step; forces
    >= 4 grid steps only when the total payload is large enough that each step
    still moves >= ~1 MiB (megacore overlap on v7x, no pointless splits on the
    single-core chips for small batches)."""
    bt = _round_up(max(_STEP_PAYLOAD // (2 * D * itemsize), 1), sub)
    bt = min(bt, _round_up(B, sub))
    bt = max(bt, sub)
    while bt > sub and vmem_bytes_fn(bt) > _VMEM_BUDGET:
        bt = _round_up(max(bt // 2, sub), sub)
    total_payload = 2 * B * D * itemsize
    if total_payload >= 4 * _MIN_STEP_PAYLOAD and _cdiv(B, bt) < 4:
        bt = max(_round_up(_cdiv(B, 4), sub), sub)
    return bt


# ---------------------------------------------------------------------------
# Static segment bookkeeping.
# ---------------------------------------------------------------------------

def _segments_perm(segments):
    """Static permutation of the last dim: out[..., j] = x[..., perm[j]]."""
    perm = []
    offset = 0
    trivial = True
    for (u, v) in segments:
        trivial = trivial and (u == 1 or v == 1)
        # input segment is (u, v) flattened (index a*v + b);
        # output segment is (v, u) flattened (index b*u + a).
        for b in range(v):
            for a in range(u):
                perm.append(offset + a * v + b)
        offset += u * v
    return tuple(perm), trivial, offset


def _build_copies(segments):
    """Static copy list: (dst_row, src_row, n_rows, src_stride), out <- in."""
    copies = []
    off = 0
    for (u, v) in segments:
        n = u * v
        if u == 1 or v == 1:
            copies.append((off, off, n, 1))        # already the identity
        else:
            # output rows [off + b*u, off + (b+1)*u) <- input rows off+b, off+b+v, ...
            for b in range(v):
                copies.append((off + b * u, off + b, u, v))
        off += n
    # merge adjacent contiguous identity copies into one block copy
    merged = []
    for d, s, n, st in copies:
        if (merged and st == 1 and merged[-1][3] == 1
                and merged[-1][0] + merged[-1][2] == d
                and merged[-1][1] + merged[-1][2] == s):
            pd, ps, pn, _ = merged[-1]
            merged[-1] = (pd, ps, pn + n, 1)
        else:
            merged.append((d, s, n, st))
    return tuple(merged)


# ---------------------------------------------------------------------------
# Float path: one-hot permutation matmul in natural (B, D) layout.
# ---------------------------------------------------------------------------

def _perm_matmul_kernel(compute_dtype, x_ref, p_ref, o_ref):
    # x_ref: (bt, D), p_ref: (D, D) 0/1 permutation matrix, o_ref: (bt, D).
    # Each output row depends only on its own input row, so garbage in the
    # padded rows of a partial batch block never leaks into valid rows.
    x = x_ref[...]
    if x.dtype != compute_dtype:
        x = x.astype(compute_dtype)     # in-register upcast, free under the DMA
    o_ref[...] = jnp.dot(
        x, p_ref[...], preferred_element_type=jnp.float32).astype(o_ref.dtype)


def _float_path(x2d, perm, D):
    B = x2d.shape[0]
    dtype = x2d.dtype
    itemsize = dtype.itemsize
    # f32/bf16 multiply natively; narrower floats (f16/f8) upcast in-kernel.
    native = (dtype == jnp.float32) or (dtype == jnp.bfloat16)
    compute_dtype = dtype if native else np.dtype(jnp.float32)
    p_item = np.dtype(compute_dtype).itemsize
    sub = max(8, 32 // itemsize)          # sublane multiple for the input dtype
    d_lanes = _round_up(D, 128)
    p_sub = _round_up(D, max(8, 32 // p_item))
    cast_slack = d_lanes * 4 if not native else 0

    def vmem_bytes(bt):
        # Lane/sublane-padded footprint: in + out blocks (double-buffered) +
        # the permutation matrix (constant index_map, but still 2 buffers) +
        # slack for the upcast temporary when casting in-kernel.
        return (4 * bt * d_lanes * itemsize
                + 2 * p_sub * d_lanes * p_item
                + bt * cast_slack)

    bt = _batch_tile(B, D, itemsize, sub, vmem_bytes)

    # Static 0/1 permutation matrix: out[:, j] = x[:, perm[j]] -> P[perm[j], j] = 1
    p_np = np.zeros((D, D), dtype=np.float32)
    p_np[np.asarray(perm), np.arange(D)] = 1.0
    p = jnp.asarray(p_np, dtype=compute_dtype)

    kernel = functools.partial(_perm_matmul_kernel, compute_dtype)
    return pl.pallas_call(
        kernel,
        out_shape=jax.ShapeDtypeStruct((B, D), dtype),
        grid=(_cdiv(B, bt),),
        in_specs=[
            pl.BlockSpec((bt, D), lambda i: (i, 0)),
            pl.BlockSpec((D, D), lambda i: (0, 0)),
        ],
        out_specs=pl.BlockSpec((bt, D), lambda i: (i, 0)),
        compiler_params=pltpu.CompilerParams(
            dimension_semantics=("parallel",),
            vmem_limit_bytes=_VMEM_LIMIT),
        cost_estimate=pl.CostEstimate(
            flops=2 * B * D * D, transcendentals=0,
            bytes_accessed=2 * B * D * itemsize + D * D * p_item),
    )(x2d, p)


# ---------------------------------------------------------------------------
# Copy path (ints / non-finite-safe floats / very large D): natural (B, D)
# layout in HBM, on-chip (XLU) relayout + grouped strided sublane copies.
# ---------------------------------------------------------------------------

def _copy_kernel(copies, x_ref, o_ref, xt_ref, ot_ref):
    # x_ref / o_ref: (bt, D) natural layout.  xt_ref / ot_ref: (D, bt) scratch.
    # The (bt, D) <-> (D, bt) relayout runs on the XLU slot inside the kernel,
    # so HBM sees exactly one read and one write.
    xt_ref[...] = x_ref[...].T
    for dst, src, n, stride in copies:
        if stride == 1:
            ot_ref[pl.ds(dst, n), :] = xt_ref[pl.ds(src, n), :]
        else:
            ot_ref[pl.ds(dst, n), :] = xt_ref[pl.ds(src, n, stride=stride), :]
    o_ref[...] = ot_ref[...].T


def _copy_path(x2d, segments, D):
    B = x2d.shape[0]
    dtype = x2d.dtype
    itemsize = dtype.itemsize
    sub = 128                              # bt is also the lane dim of the scratch
    d_lanes = _round_up(D, 128)
    d_sub = _round_up(D, max(8, 32 // itemsize))

    def vmem_bytes(bt):
        return (4 * bt * d_lanes * itemsize                       # in+out blocks, x2 buffers
                + 2 * d_sub * _round_up(bt, 128) * itemsize)      # the two scratches

    bt = _batch_tile(B, D, itemsize, sub, vmem_bytes)

    kernel = functools.partial(_copy_kernel, _build_copies(segments))
    return pl.pallas_call(
        kernel,
        out_shape=jax.ShapeDtypeStruct((B, D), dtype),
        grid=(_cdiv(B, bt),),
        in_specs=[pl.BlockSpec((bt, D), lambda i: (i, 0))],
        out_specs=pl.BlockSpec((bt, D), lambda i: (i, 0)),
        scratch_shapes=[pltpu.VMEM((D, bt), dtype),
                        pltpu.VMEM((D, bt), dtype)],
        compiler_params=pltpu.CompilerParams(
            dimension_semantics=("parallel",),
            vmem_limit_bytes=_VMEM_LIMIT),
        cost_estimate=pl.CostEstimate(
            flops=0, transcendentals=0,
            bytes_accessed=2 * B * D * itemsize),
    )(x2d)


# ---------------------------------------------------------------------------
# Public entry point (mirrors TransposeSegments.forward)
# ---------------------------------------------------------------------------

def transpose_segments(x, segments, *, assume_finite=True):
    """JAX/Pallas equivalent of TransposeSegments(segments)(x).

    assume_finite=False routes float inputs through the pure-copy kernel (the
    one-hot MXU matmul turns a +/-Inf or NaN anywhere in a row into NaNs for
    that whole row via 0*Inf in the accumulation)."""
    perm, trivial, D = _segments_perm(segments)
    assert x.shape[-1] == D, (x.shape, D)
    if trivial:
        return x                               # torch.nn.Identity() branch

    batch_shape = x.shape[:-1]
    B = int(np.prod(batch_shape)) if batch_shape else 1
    x2d = x.reshape(B, D)                      # free: D stays innermost
    dtype = x2d.dtype

    is_float = jnp.issubdtype(dtype, jnp.floating) and dtype.itemsize <= 4
    # Dense one-hot P footprint (double-buffered, VMEM-padded).  Beyond this
    # the matmul stops being HBM-bound / stops fitting VMEM -> copy kernel.
    p_item = dtype.itemsize if (dtype == jnp.float32 or dtype == jnp.bfloat16) else 4
    p_bytes = 2 * _round_up(D, max(8, 32 // p_item)) * _round_up(D, 128) * p_item
    use_matmul = is_float and assume_finite and p_bytes <= _VMEM_BUDGET // 4

    if use_matmul:
        out2d = _float_path(x2d, perm, D)
    else:
        # TODO(synk): 64-bit dtypes (x64 mode) rely on in-kernel 64-bit
        # transposes, which Mosaic may not lower; not exercised here.
        out2d = _copy_path(x2d, segments, D)

    return out2d.reshape(batch_shape + (D,))


def ref_transpose_segments(x, segments):
    """Pure-JAX reference mirroring _transpose_segments_fx."""
    outs = []
    off = 0
    for (u, v) in segments:
        seg = x[..., off:off + u * v].reshape(x.shape[:-1] + (u, v))
        outs.append(jnp.swapaxes(seg, -2, -1).reshape(x.shape[:-1] + (u * v,)))
        off += u * v
    return jnp.concatenate(outs, axis=-1)


if __name__ == "__main__":
    # Non-trivial segment list (mix of trivial and non-trivial segments).
    segments = [(2, 3), (4, 5), (1, 7), (3, 3)]
    D = sum(u * v for u, v in segments)        # 42

    k1, k2, k3, k4 = jax.random.split(jax.random.PRNGKey(0), 4)

    # float32, small batch (matmul path, single grid step)
    x = jax.random.normal(k1, (2, 4, D), dtype=jnp.float32)
    y = jax.block_until_ready(transpose_segments(x, segments))
    np.testing.assert_array_equal(
        np.asarray(y), np.asarray(ref_transpose_segments(x, segments)))

    # float32, large batch: payload-sized tiles, multi-step grid, partial block
    xl = jax.random.normal(k2, (20000, D), dtype=jnp.float32)
    yl = jax.block_until_ready(transpose_segments(xl, segments))
    np.testing.assert_array_equal(
        np.asarray(yl), np.asarray(ref_transpose_segments(xl, segments)))

    # bfloat16 (one-hot matmul with f32 accumulation is exact)
    xh = jax.random.normal(k3, (3, 5, D), dtype=jnp.bfloat16)
    yh = jax.block_until_ready(transpose_segments(xh, segments))
    np.testing.assert_array_equal(
        np.asarray(yh.astype(jnp.float32)),
        np.asarray(ref_transpose_segments(xh, segments).astype(jnp.float32)))

    # int32 -> copy kernel with in-kernel relayout (small batch)
    xi = jax.random.randint(jax.random.PRNGKey(1), (2, 4, D), -100, 100,
                            dtype=jnp.int32)
    yi = jax.block_until_ready(transpose_segments(xi, segments))
    np.testing.assert_array_equal(
        np.asarray(yi), np.asarray(ref_transpose_segments(xi, segments)))

    # int32, large batch (multi-step copy-kernel grid)
    xI = jax.random.randint(jax.random.PRNGKey(3), (12800, D), -1000000, 1000000,
                            dtype=jnp.int32)
    yI = jax.block_until_ready(transpose_segments(xI, segments))
    np.testing.assert_array_equal(
        np.asarray(yI), np.asarray(ref_transpose_segments(xI, segments)))

    # float32 with non-finite values -> copy kernel (exact data move, no NaN
    # contamination from the one-hot matmul)
    xs = x.at[0, 0, 5].set(jnp.inf).at[1, 2, 10].set(jnp.nan)
    ys = jax.block_until_ready(
        transpose_segments(xs, segments, assume_finite=False))
    np.testing.assert_array_equal(
        np.asarray(ys), np.asarray(ref_transpose_segments(xs, segments)))

    # Trivial-segments case -> Identity path (no kernel launch).
    segments_trivial = [(1, 2), (3, 1)]
    x2 = jax.random.normal(k4, (2, 4, 5), dtype=jnp.float32)
    y2 = jax.block_until_ready(transpose_segments(x2, segments_trivial))
    np.testing.assert_array_equal(np.asarray(y2), np.asarray(x2))

    print("KERNEL_OK")
</pallas_src>

<mosaic_0001>
module attributes {stable_mosaic.version = 11 : i64} {
  func.func @_perm_matmul_kernel(%arg0: i32, %arg1: memref<8x42xf32, #tpu.memory_space<vmem>>, %arg2: memref<42x42xf32, #tpu.memory_space<vmem>>, %arg3: memref<8x42xf32, #tpu.memory_space<vmem>>) attributes {dimension_semantics = [#tpu.dimension_semantics<parallel>], iteration_bounds = array<i64: 1>, scalar_prefetch = 0 : i64, scratch_operands = 0 : i64, tpu.core_type = #tpu.core_type<tc>, window_params = [{transform_indices = @transform_0, window_bounds = array<i64: 8, 42>}, {pipeline_mode = #tpu.pipeline_mode<synchronous>, transform_indices = @transform_1, window_bounds = array<i64: 42, 42>}, {transform_indices = @transform_2, window_bounds = array<i64: 8, 42>}]} {
    %c0 = arith.constant 0 : index
    %c0_0 = arith.constant 0 : index
    %0 = vector.load %arg1[%c0, %c0_0] : memref<8x42xf32, #tpu.memory_space<vmem>>, vector<8x42xf32>
    %c0_1 = arith.constant 0 : index
    %c0_2 = arith.constant 0 : index
    %1 = vector.load %arg2[%c0_1, %c0_2] : memref<42x42xf32, #tpu.memory_space<vmem>>, vector<42x42xf32>
    %cst = arith.constant dense<0.000000e+00> : vector<8x42xf32>
    %2 = tpu.matmul %0, %1, %cst {dimension_numbers = #tpu.dot_dimension_numbers<[1], [0], [0], [1], [0, 0, 1, 1], [], []>} : vector<8x42xf32>, vector<42x42xf32>, vector<8x42xf32> -> vector<8x42xf32>
    %c0_3 = arith.constant 0 : index
    %c0_4 = arith.constant 0 : index
    %3 = vector.load %arg3[%c0_3, %c0_4] : memref<8x42xf32, #tpu.memory_space<vmem>>, vector<8x42xf32>
    tpu.vector_store %arg3[%c0_3, %c0_4], %2 {strides = array<i32>} : memref<8x42xf32, #tpu.memory_space<vmem>>, vector<8x42xf32>,
    return
  }
  func.func @transform_0(%arg0: i32) -> (i32, i32) {
    %c0_i32 = arith.constant 0 : i32
    %c0_i32_0 = arith.constant 0 : i32
    return %arg0, %c0_i32 : i32, i32
  }
  func.func @transform_1(%arg0: i32) -> (i32, i32) {
    %c0_i32 = arith.constant 0 : i32
    %c0_i32_0 = arith.constant 0 : i32
    %c0_i32_1 = arith.constant 0 : i32
    return %c0_i32, %c0_i32_0 : i32, i32
  }
  func.func @transform_2(%arg0: i32) -> (i32, i32) {
    %c0_i32 = arith.constant 0 : i32
    %c0_i32_0 = arith.constant 0 : i32
    return %arg0, %c0_i32 : i32, i32
  }
}

</mosaic_0001>

<llo_original>
// kernel: tpu_custom_call.1
$region0: #{tpu_custom_call.1}
  #allocation0 [shape = 'u32[]', space=smem, size = 0x4, offset = 0x4, fixed_abs, tag = 'smem constant byte address 0x4 - core index']
  #allocation1 [shape = 'u32[144,128]{1,0:T(1,128)}', space=vmem, size = 0x12000, scoped, tag = 'internal scratch']
  %s0 = inlined_call_operand.hbm [shape: f32[8,42], index: 0, kind: input, shape index: {}]
  %s1 = inlined_call_operand.hbm [shape: f32[42,42], index: 1, kind: input, shape index: {}]
  %s2 = inlined_call_operand.hbm [shape: f32[8,42], index: 2, kind: output, shape index: {}]
  %s3 = sld [smem:[#allocation0]]
  $region26: #{tpu_custom_call.1} parent=0
    _
  %s5 = ssub.s32 1, %s3
  %s6 = scalar_select 0, %s5, %s3
  $region1: #{tpu_custom_call.1} parent=0
    #allocation2 [shape = 'u8[4096]{0}', space=vmem, size = 0x1000, scoped, tag = 'input window, operand 0, single buffered']
    #allocation3 [shape = 's32[1]{0}', space=sflag, size = 0x4, scoped, tag = 'scoped memory for tpu_custom_call.1']
    #allocation4 [shape = 's32[1]{0}', space=sflag, size = 0x4, scoped, tag = 'scoped memory for tpu_custom_call.1']
    #allocation5 [shape = 'u8[24576]{0}', space=vmem, size = 0x6000, scoped, tag = 'input window, operand 1, single buffered']
    #allocation6 [shape = 's32[1]{0}', space=sflag, size = 0x4, scoped, tag = 'scoped memory for tpu_custom_call.1']
    #allocation7 [shape = 'u8[4096]{0}', space=vmem, size = 0x1000, scoped, tag = 'output window, operand 0, single buffered']
    %7 = vsyncpa [#allocation3], 0
    %8 = vsyncpa [#allocation6], 0
    %9 = vsyncpa [#allocation4], 0
    // Predicated region
    $region2: #{tpu_custom_call.1} parent=1 // pred_check
      _
    $region3: #{tpu_custom_call.1} parent=1 // pred_check_branch
      %11 = sbr.rel (0) target = $region5
    $region4: #{tpu_custom_call.1} parent=1 // pred_region
      %s13 = ssub.s32 128, 128
      %14 = vsyncadd [#allocation3], %s13
      %s16 = sshll.u32 [#allocation2], 4
      %s17 = int_to_ptr.vmem [resolvable:$true] %s16
      %19 = dma.hbm_to_vmem [thread:$0]  %s0, 128, %s17, [#allocation3]
    $region5: #{tpu_custom_call.1} parent=1 // pred_fallthru
      _
    // Predicated region
    $region6: #{tpu_custom_call.1} parent=1 // pred_check
      _
    $region7: #{tpu_custom_call.1} parent=1 // pred_check_branch
      %21 = sbr.rel (0) target = $region9
    $region8: #{tpu_custom_call.1} parent=1 // pred_region
      %s23 = ssub.s32 768, 768
      %24 = vsyncadd [#allocation6], %s23
      %s25 = sshll.u32 [#allocation5], 4
      %s26 = int_to_ptr.vmem [resolvable:$true] %s25
      %31 = dma.hbm_to_vmem [thread:$0]  %s1, 768, %s26, [#allocation6], 128, 128, 8
    $region9: #{tpu_custom_call.1} parent=1 // pred_fallthru
      _
    // Predicated region
    $region10: #{tpu_custom_call.1} parent=1 // pred_check
      _
    $region11: #{tpu_custom_call.1} parent=1 // pred_check_branch
      %33 = sbr.rel (0) target = $region13
    $region12: #{tpu_custom_call.1} parent=1 // pred_region
      %34 = dma.done [#allocation3], 128
    $region13: #{tpu_custom_call.1} parent=1 // pred_fallthru
      _
    // Predicated region
    $region14: #{tpu_custom_call.1} parent=1 // pred_check
      _
    $region15: #{tpu_custom_call.1} parent=1 // pred_check_branch
      %36 = sbr.rel (0) target = $region17
    $region16: #{tpu_custom_call.1} parent=1 // pred_region
      %37 = dma.done [#allocation6], 768
    $region17: #{tpu_custom_call.1} parent=1 // pred_fallthru
      _
    %v38 = vld [vmem:[#allocation2] sm:$0xff]
    %v39 = vld [vmem:[#allocation5] sm:$0xff]
    %v40 = vld [vmem:[#allocation5 + $0x8] sm:$0xff]
    %v41 = vld [vmem:[#allocation5 + $0x10] sm:$0xff]
    %v42 = vld [vmem:[#allocation5 + $0x18] sm:$0xff]
    %v43 = vld [vmem:[#allocation5 + $0x20] sm:$0xff]
    %v44 = vld [vmem:[#allocation5 + $0x28] sm:$0x3]
    %vm45 = vcmask 343040
    %v47 = vsel %vm45, %v38, 0
    %vm49 = vcmask 1041408
    %v51 = vsel %vm49, %v44, 0
    %53 = vmatprep.subr.mxu0 0.0
    %54 = vmatpush1.msra.mxu0 0.0
    %55 = vmatprep.subr.mxu0 0.0
    %56 = vmatpush1.msra.mxu0 0.0
    %57 = vmatprep.subr.mxu0 0.0
    %58 = vmatpush1.msra.mxu0 0.0
    %59 = vmatprep.subr.mxu0 0.0
    %60 = vmatpush1.msra.mxu0 0.0
    %61 = vmatprep.subr.mxu0 0.0
    %62 = vmatpush1.msra.mxu0 0.0
    %63 = vmatprep.subr.mxu0 0.0
    %64 = vmatpush1.msra.mxu0 0.0
    %65 = vmatprep.subr.mxu0 0.0
    %66 = vmatpush1.msra.mxu0 0.0
    %67 = vmatprep.subr.mxu0 0.0
    %68 = vmatpush1.msra.mxu0 0.0
    %69 = vmatprep.subr.mxu0 0.0
    %70 = vmatpush1.msra.mxu0 0.0
    %71 = vmatprep.subr.mxu0 0.0
    %72 = vmatpush1.msra.mxu0 0.0
    %73 = vmatprep.subr.mxu0 0.0
    %74 = vmatpush1.msra.mxu0 %v51
    %75 = vmatprep.subr.mxu0 0.0
    %76 = vmatpush1.msra.mxu0 %v43
    %77 = vmatprep.subr.mxu0 0.0
    %78 = vmatpush1.msra.mxu0 %v42
    %79 = vmatprep.subr.mxu0 0.0
    %80 = vmatpush1.msra.mxu0 %v41
    %81 = vmatprep.subr.mxu0 0.0
    %82 = vmatpush1.msra.mxu0 %v40
    %83 = vmatprep.subr.mxu0 0.0
    %84 = vmatpush1.msra.mxu0 %v39
    %85 = vmatprep.subr.mxu0 0.0
    %86 = vmatpush2.msra.mxu0 0.0
    %87 = vmatprep.subr.mxu0 0.0
    %88 = vmatpush2.msra.mxu0 0.0
    %89 = vmatprep.subr.mxu0 0.0
    %90 = vmatpush2.msra.mxu0 0.0
    %91 = vmatprep.subr.mxu0 0.0
    %92 = vmatpush2.msra.mxu0 0.0
    %93 = vmatprep.subr.mxu0 0.0
    %94 = vmatpush2.msra.mxu0 0.0
    %95 = vmatprep.subr.mxu0 0.0
    %96 = vmatpush2.msra.mxu0 0.0
    %97 = vmatprep.subr.mxu0 0.0
    %98 = vmatpush2.msra.mxu0 0.0
    %99 = vmatprep.subr.mxu0 0.0
    %100 = vmatpush2.msra.mxu0 0.0
    %101 = vmatprep.subr.mxu0 0.0
    %102 = vmatpush2.msra.mxu0 0.0
    %103 = vmatprep.subr.mxu0 0.0
    %104 = vmatpush2.msra.mxu0 0.0
    %105 = vmatprep.subr.mxu0 0.0
    %106 = vmatpush2.msra.mxu0 0.0
    %107 = vmatprep.subr.mxu0 0.0
    %108 = vmatpush2.msra.mxu0 0.0
    %109 = vmatprep.subr.mxu0 0.0
    %110 = vmatpush2.msra.mxu0 0.0
    %111 = vmatprep.subr.mxu0 0.0
    %112 = vmatpush2.msra.mxu0 0.0
    %113 = vmatprep.subr.mxu0 0.0
    %114 = vmatpush2.msra.mxu0 0.0
    %115 = vmatprep.subr.mxu0 0.0
    %116 = vmatpush2.msra.mxu0 0.0
    %117 = vmatprep.mubr.f32.mxu0 0.0
    %118 = vmatmul.mubr.f32.gmra.mxu0 %v47
    %v119 = vpop.f32.mrf.mxu0
    %v120 = vadd.f32 0.0, %v119
    %v121 = vpop.f32.mrf.mxu0
    %122 = vdwg.mxu0
    %123 = vst.msk [vmem:[#allocation7] sm:$0xff] %vm45, %v120
    // Predicated region
    $region18: #{tpu_custom_call.1} parent=1 // pred_check
      _
    $region19: #{tpu_custom_call.1} parent=1 // pred_check_branch
      %125 = sbr.rel (0) target = $region21
    $region20: #{tpu_custom_call.1} parent=1 // pred_region
      %s127 = ssub.s32 128, 128
      %128 = vsyncadd [#allocation4], %s127
      %s130 = sshll.u32 [#allocation7], 4
      %s131 = int_to_ptr.vmem [resolvable:$true] %s130
      %133 = dma.vmem_to_hbm [thread:$0]  %s131, 128, %s2, [#allocation4]
    $region21: #{tpu_custom_call.1} parent=1 // pred_fallthru
      _
    // Predicated region
    $region22: #{tpu_custom_call.1} parent=1 // pred_check
      _
    $region23: #{tpu_custom_call.1} parent=1 // pred_check_branch
      %135 = sbr.rel (0) target = $region25
    $region24: #{tpu_custom_call.1} parent=1 // pred_region
      %136 = dma.done [#allocation4], 128
    $region25: #{tpu_custom_call.1} parent=1 // pred_fallthru
      _
    %137 = vsyncpa [#allocation3], 1
    %138 = vsyncpa [#allocation6], 1
    %139 = vsyncpa [#allocation4], 1

</llo_original>
